<compile_context>
chip_gen: v7x
topology: tpu7x:2x2x1
jax: 0.10.0
libtpu: 0.0.40
codegen_flags: <defaults>
</compile_context>

<pallas_src>
import functools

import jax
import jax.numpy as jnp
from jax.experimental import pallas as pl
from jax.experimental.pallas import tpu as pltpu

OUT_W = 128  # lane-dense packed output slab width (one 128-lane-wide block per row)


def _actor_critic_kernel(x_ref, act_ref, w1_ref, b1_ref, w2_ref, b2_ref, out_ref,
                         *, action_dim):
    A = action_dim
    tb = x_ref.shape[0]

    x = x_ref[...]  # [TB, S] (f32 or bf16)

    # ---- fused layer-1: [TB, S] @ [S, 2H] -> h = [h_actor | h_critic], f32 acc ----
    h = jnp.dot(x, w1_ref[...], preferred_element_type=jnp.float32) + b1_ref[...]
    h = jnp.maximum(h, 0.0)  # shared ReLU (both branches have ReLU after layer-1)

    # ---- fused heads: block-diag [2H, A+1] -> [logits | value], one MXU push ----
    head = jnp.dot(h.astype(w2_ref.dtype), w2_ref[...],
                   preferred_element_type=jnp.float32) + b2_ref[...]
    logits = head[:, :A]           # [TB, A]
    values = head[:, A:A + 1]      # [TB, 1]

    # ---- numerically stable softmax / log-softmax / entropy (all f32) ----
    m = jnp.max(logits, axis=-1, keepdims=True)
    shifted = logits - m
    e = jnp.exp(shifted)
    denom = jnp.sum(e, axis=-1, keepdims=True)
    inv = pl.reciprocal(denom, approx=False)   # exact; keeps the 1e-5 tolerance
    probs = e * inv
    log_denom = jnp.log(denom)                 # reused for logprob and entropy
    log_probs_all = shifted - log_denom        # [TB, A]

    # per-action log_prob via in-kernel iota mask (no host one_hot, 4x less HBM in)
    # NOTE: out-of-range actions silently yield log_prob=0 (mask all-false);
    # assert validity upstream if torch-gather error semantics are required.
    act = act_ref[...]                                           # [TB, 1] int32
    col = jax.lax.broadcasted_iota(jnp.int32, (tb, A), 1)        # [TB, A]
    mask = col == act
    logprob = jnp.sum(jnp.where(mask, log_probs_all, 0.0), axis=-1, keepdims=True)
    entropy = -jnp.sum(probs * log_probs_all, axis=-1, keepdims=True)

    # ---- sliced stores into the lane-dense [TB, 128] output tile ----
    # (no full-width concat temporary; only the pad lanes are zeroed so the
    #  packed slab is deterministic if consumed directly downstream)
    odt = out_ref.dtype
    out_ref[:, :A] = probs.astype(odt)
    out_ref[:, A:A + 1] = values.astype(odt)
    out_ref[:, A + 1:A + 2] = logprob.astype(odt)
    out_ref[:, A + 2:A + 3] = entropy.astype(odt)
    out_ref[:, A + 3:] = jnp.zeros((tb, OUT_W - (A + 3)), odt)


def _round_up(x, m):
    return ((x + m - 1) // m) * m


def fuse_params(params):
    """One-time parameter fusion (do this once, outside the training step)."""
    w1a, w1c = params["w1a"], params["w1c"]
    b1a, b1c = params["b1a"], params["b1c"]
    w2a, w2c = params["w2a"], params["w2c"]
    b2a, b2c = params["b2a"], params["b2c"]
    S, H = w1a.shape
    A = w2a.shape[1]
    w1 = jnp.concatenate([w1a, w1c], axis=1)          # [S, 2H]
    b1 = jnp.concatenate([b1a, b1c], axis=1)          # [1, 2H]
    w2 = jnp.zeros((2 * H, A + 1), jnp.float32)       # block-diagonal head weight
    w2 = w2.at[:H, :A].set(w2a)
    w2 = w2.at[H:, A:].set(w2c)
    b2 = jnp.concatenate([b2a, b2c], axis=1)          # [1, A+1]
    return dict(w1=w1, b1=b1, w2=w2, b2=b2, action_dim=A)


def actor_critic_evaluate(state, action, fused, *,
                          matmul_dtype=jnp.float32,    # f32 default: bf16 operands don't pay at S=8/H=64
                          out_dtype=jnp.float32,       # bf16 halves the dominant output DMA if tolerances allow
                          max_batch_tile=4096,         # primary tuning knob for large B
                          core_parallel=False,         # set True on v7x (2 TCs)
                          return_packed=False):
    """state: [B, S] f32, action: [B] int, fused: output of fuse_params."""
    B, S = state.shape
    H2 = fused["w1"].shape[1]          # 2H
    A = fused["action_dim"]
    assert A + 3 <= OUT_W

    # Tiny pad (<= 7 rows) so the batch dim is a multiple of 8 for sublane tiling.
    # A ragged last TB-tile (B8 % TB != 0) needs NO host pad: Pallas clips the
    # overhanging output block and the overhanging input rows are row-independent.
    B8 = _round_up(B, 8)
    TB = min(_round_up(max_batch_tile, 8), B8)
    grid = (pl.cdiv(B8, TB),)

    if B8 != B:
        state = jnp.pad(state, ((0, B8 - B), (0, 0)))
        action = jnp.pad(action, ((0, B8 - B),))
    action2d = action.astype(jnp.int32).reshape(B8, 1)

    x = state.astype(matmul_dtype)
    w1 = fused["w1"].astype(matmul_dtype)
    w2 = fused["w2"].astype(matmul_dtype)
    b1 = fused["b1"].astype(jnp.float32)
    b2 = fused["b2"].astype(jnp.float32)

    # Explicit VMEM budget: double-buffered output slab + input tiles + resident
    # weights + in-body temporaries (h is the largest), with 2x margin.
    in_bytes = jnp.dtype(matmul_dtype).itemsize
    out_bytes = jnp.dtype(out_dtype).itemsize
    tile_bytes = (2 * TB * OUT_W * out_bytes          # output slab (double-buffered)
                  + 2 * TB * S * in_bytes             # state tile
                  + 2 * TB * 4                        # action tile
                  + 2 * (S * H2 + H2 * (A + 1)) * in_bytes
                  + 2 * (H2 + A + 1) * 4              # weights / biases
                  + 2 * TB * H2 * 4)                  # h + epilogue temporaries
    vmem_limit = int(min(max(2 * tile_bytes, 32 << 20), 48 << 20))

    batch_sem = pltpu.CORE_PARALLEL if core_parallel else "parallel"

    kernel = functools.partial(_actor_critic_kernel, action_dim=A)

    out = pl.pallas_call(
        kernel,
        out_shape=jax.ShapeDtypeStruct((B8, OUT_W), out_dtype),
        grid=grid,
        in_specs=[
            pl.BlockSpec((TB, S), lambda i: (i, 0)),        # state tile
            pl.BlockSpec((TB, 1), lambda i: (i, 0)),        # action tile
            pl.BlockSpec((S, H2), lambda i: (0, 0)),        # fused W1 (resident)
            pl.BlockSpec((1, H2), lambda i: (0, 0)),        # fused b1 (resident)
            pl.BlockSpec((H2, A + 1), lambda i: (0, 0)),    # fused W2 (resident)
            pl.BlockSpec((1, A + 1), lambda i: (0, 0)),     # fused b2 (resident)
        ],
        out_specs=pl.BlockSpec((TB, OUT_W), lambda i: (i, 0)),
        compiler_params=pltpu.CompilerParams(
            dimension_semantics=(batch_sem,),
            vmem_limit_bytes=vmem_limit,
        ),
    )(x, action2d, w1, b1, w2, b2)

    out = out[:B]
    if return_packed:
        # [B, 128] slab: [:A]=probs, [A]=value, [A+1]=logprob, [A+2]=entropy.
        # Consuming this directly avoids 4 extra fused-slice XLA kernels.
        return out
    probs = out[:, :A]
    values = out[:, A:A + 1]
    logprob = out[:, A + 1]
    entropy = out[:, A + 2]
    return probs, values, logprob, entropy


def init_params(key, state_dim, action_dim, hidden=64):
    ks = jax.random.split(key, 8)

    def lin(kw, kb, fan_in, fan_out):
        bound = 1.0 / jnp.sqrt(jnp.float32(fan_in))
        w = jax.random.uniform(kw, (fan_in, fan_out), jnp.float32, -bound, bound)
        b = jax.random.uniform(kb, (1, fan_out), jnp.float32, -bound, bound)
        return w, b

    w1a, b1a = lin(ks[0], ks[1], state_dim, hidden)
    w2a, b2a = lin(ks[2], ks[3], hidden, action_dim)
    w1c, b1c = lin(ks[4], ks[5], state_dim, hidden)
    w2c, b2c = lin(ks[6], ks[7], hidden, 1)
    return dict(w1a=w1a, b1a=b1a, w2a=w2a, b2a=b2a,
                w1c=w1c, b1c=b1c, w2c=w2c, b2c=b2c)


def reference_evaluate(state, action, p):
    h_a = jnp.maximum(state @ p["w1a"] + p["b1a"], 0.0)
    logits = h_a @ p["w2a"] + p["b2a"]
    probs = jax.nn.softmax(logits, axis=-1)
    logp_all = jax.nn.log_softmax(logits, axis=-1)
    logp = jnp.take_along_axis(logp_all, action[:, None], axis=-1)[:, 0]
    ent = -jnp.sum(probs * logp_all, axis=-1)
    h_c = jnp.maximum(state @ p["w1c"] + p["b1c"], 0.0)
    values = h_c @ p["w2c"] + p["b2c"]
    return probs, values, logp, ent


if __name__ == "__main__":
    # chain-MDP-ish small shapes
    STATE_DIM, ACTION_DIM = 8, 4

    key = jax.random.PRNGKey(0)
    k_state, k_act, k_param = jax.random.split(key, 3)
    params = init_params(k_param, STATE_DIM, ACTION_DIM)
    fused = fuse_params(params)

    # --- test 1: toy batch, single tile, f32 path, tight check ---
    B = 8
    state = jax.random.normal(k_state, (B, STATE_DIM), jnp.float32)
    action = jax.random.randint(k_act, (B,), 0, ACTION_DIM, jnp.int32)

    probs, values, logprob, entropy = actor_critic_evaluate(state, action, fused)
    jax.block_until_ready((probs, values, logprob, entropy))

    r_probs, r_values, r_logp, r_ent = reference_evaluate(state, action, params)
    assert jnp.allclose(probs, r_probs, atol=1e-5, rtol=1e-5)
    assert jnp.allclose(values, r_values, atol=1e-5, rtol=1e-5)
    assert jnp.allclose(logprob, r_logp, atol=1e-5, rtol=1e-5)
    assert jnp.allclose(entropy, r_ent, atol=1e-5, rtol=1e-5)

    # --- test 2: multi-tile grid with a ragged (overhanging) last tile, no host
    #     round-up-to-TB padding; still bit-tight on the valid rows ---
    B2 = 200
    k_s2, k_a2 = jax.random.split(jax.random.PRNGKey(1), 2)
    state2 = jax.random.normal(k_s2, (B2, STATE_DIM), jnp.float32)
    action2 = jax.random.randint(k_a2, (B2,), 0, ACTION_DIM, jnp.int32)

    p2, v2, lp2, en2 = actor_critic_evaluate(state2, action2, fused,
                                             max_batch_tile=64)
    jax.block_until_ready((p2, v2, lp2, en2))
    r_p2, r_v2, r_lp2, r_en2 = reference_evaluate(state2, action2, params)
    assert jnp.allclose(p2, r_p2, atol=1e-5, rtol=1e-5)
    assert jnp.allclose(v2, r_v2, atol=1e-5, rtol=1e-5)
    assert jnp.allclose(lp2, r_lp2, atol=1e-5, rtol=1e-5)
    assert jnp.allclose(en2, r_en2, atol=1e-5, rtol=1e-5)

    # --- test 3: bf16 output slab (halves the dominant output DMA), loose check ---
    b_probs, b_values, b_logp, b_ent = actor_critic_evaluate(
        state, action, fused, out_dtype=jnp.bfloat16)
    jax.block_until_ready((b_probs, b_values, b_logp, b_ent))
    assert jnp.allclose(b_probs.astype(jnp.float32), r_probs, atol=5e-2, rtol=5e-2)
    assert jnp.allclose(b_values.astype(jnp.float32), r_values, atol=5e-2, rtol=5e-2)
    assert jnp.allclose(b_logp.astype(jnp.float32), r_logp, atol=5e-2, rtol=5e-2)
    assert jnp.allclose(b_ent.astype(jnp.float32), r_ent, atol=5e-2, rtol=5e-2)

    # TODO(synk): act()'s Categorical(dist).sample() is stochastic; sampling stays
    # in host/JAX RNG — the kernel exposes the action_probs needed to sample.
    print("KERNEL_OK")
</pallas_src>

<mosaic_0001>
module attributes {stable_mosaic.version = 11 : i64} {
  func.func @_actor_critic_kernel(%arg0: i32, %arg1: memref<8x8xf32, #tpu.memory_space<vmem>>, %arg2: memref<8x1xi32, #tpu.memory_space<vmem>>, %arg3: memref<8x128xf32, #tpu.memory_space<vmem>>, %arg4: memref<1x128xf32, #tpu.memory_space<vmem>>, %arg5: memref<128x5xf32, #tpu.memory_space<vmem>>, %arg6: memref<1x5xf32, #tpu.memory_space<vmem>>, %arg7: memref<8x128xf32, #tpu.memory_space<vmem>>) attributes {dimension_semantics = [#tpu.dimension_semantics<parallel>], iteration_bounds = array<i64: 1>, scalar_prefetch = 0 : i64, scratch_operands = 0 : i64, tpu.core_type = #tpu.core_type<tc>, window_params = [{transform_indices = @transform_0, window_bounds = array<i64: 8, 8>}, {transform_indices = @transform_1, window_bounds = array<i64: 8, 1>}, {pipeline_mode = #tpu.pipeline_mode<synchronous>, transform_indices = @transform_2, window_bounds = array<i64: 8, 128>}, {pipeline_mode = #tpu.pipeline_mode<synchronous>, transform_indices = @transform_3, window_bounds = array<i64: 1, 128>}, {pipeline_mode = #tpu.pipeline_mode<synchronous>, transform_indices = @transform_4, window_bounds = array<i64: 128, 5>}, {pipeline_mode = #tpu.pipeline_mode<synchronous>, transform_indices = @transform_5, window_bounds = array<i64: 1, 5>}, {transform_indices = @transform_6, window_bounds = array<i64: 8, 128>}]} {
    %c0 = arith.constant 0 : index
    %c0_0 = arith.constant 0 : index
    %0 = vector.load %arg1[%c0, %c0_0] : memref<8x8xf32, #tpu.memory_space<vmem>>, vector<8x8xf32>
    %c0_1 = arith.constant 0 : index
    %c0_2 = arith.constant 0 : index
    %1 = vector.load %arg3[%c0_1, %c0_2] : memref<8x128xf32, #tpu.memory_space<vmem>>, vector<8x128xf32>
    %cst = arith.constant dense<0.000000e+00> : vector<8x128xf32>
    %2 = tpu.matmul %0, %1, %cst {dimension_numbers = #tpu.dot_dimension_numbers<[1], [0], [0], [1], [0, 0, 1, 1], [], []>} : vector<8x8xf32>, vector<8x128xf32>, vector<8x128xf32> -> vector<8x128xf32>
    %c0_3 = arith.constant 0 : index
    %c0_4 = arith.constant 0 : index
    %3 = vector.load %arg4[%c0_3, %c0_4] : memref<1x128xf32, #tpu.memory_space<vmem>>, vector<1x128xf32>
    %4 = vector.broadcast %3 : vector<1x128xf32> to vector<8x128xf32>
    %5 = arith.addf %2, %4 : vector<8x128xf32>
    %cst_5 = arith.constant 0.000000e+00 : f32
    %6 = vector.broadcast %cst_5 : f32 to vector<8x128xf32>
    %7 = arith.maximumf %5, %6 : vector<8x128xf32>
    %c0_6 = arith.constant 0 : index
    %c0_7 = arith.constant 0 : index
    %8 = vector.load %arg5[%c0_6, %c0_7] : memref<128x5xf32, #tpu.memory_space<vmem>>, vector<128x5xf32>
    %cst_8 = arith.constant dense<0.000000e+00> : vector<8x5xf32>
    %9 = tpu.matmul %7, %8, %cst_8 {dimension_numbers = #tpu.dot_dimension_numbers<[1], [0], [0], [1], [0, 0, 1, 1], [], []>} : vector<8x128xf32>, vector<128x5xf32>, vector<8x5xf32> -> vector<8x5xf32>
    %c0_9 = arith.constant 0 : index
    %c0_10 = arith.constant 0 : index
    %10 = vector.load %arg6[%c0_9, %c0_10] : memref<1x5xf32, #tpu.memory_space<vmem>>, vector<1x5xf32>
    %11 = vector.broadcast %10 : vector<1x5xf32> to vector<8x5xf32>
    %12 = arith.addf %9, %11 : vector<8x5xf32>
    %13 = vector.extract_strided_slice %12 {offsets = [0, 0], sizes = [8, 4], strides = [1, 1]} : vector<8x5xf32> to vector<8x4xf32>
    %14 = vector.extract_strided_slice %12 {offsets = [0, 4], sizes = [8, 1], strides = [1, 1]} : vector<8x5xf32> to vector<8x1xf32>
    %cst_11 = arith.constant dense<0xFF800000> : vector<8xf32>
    %15 = vector.multi_reduction <maximumf>, %13, %cst_11 [1] : vector<8x4xf32> to vector<8xf32>
    %16 = vector.shape_cast %15 : vector<8xf32> to vector<8x1xf32>
    %17 = vector.broadcast %16 : vector<8x1xf32> to vector<8x4xf32>
    %18 = arith.subf %13, %17 : vector<8x4xf32>
    %19 = math.exp %18 : vector<8x4xf32>
    %cst_12 = arith.constant dense<0.000000e+00> : vector<8xf32>
    %20 = vector.multi_reduction <add>, %19, %cst_12 [1] : vector<8x4xf32> to vector<8xf32>
    %21 = vector.shape_cast %20 : vector<8xf32> to vector<8x1xf32>
    %22 = tpu.reciprocal %21 : vector<8x1xf32> -> vector<8x1xf32>
    %23 = vector.broadcast %22 : vector<8x1xf32> to vector<8x4xf32>
    %24 = arith.mulf %19, %23 : vector<8x4xf32>
    %25 = math.log %21 : vector<8x1xf32>
    %26 = vector.broadcast %25 : vector<8x1xf32> to vector<8x4xf32>
    %27 = arith.subf %18, %26 : vector<8x4xf32>
    %c0_13 = arith.constant 0 : index
    %c0_14 = arith.constant 0 : index
    %28 = vector.load %arg2[%c0_13, %c0_14] : memref<8x1xi32, #tpu.memory_space<vmem>>, vector<8x1xi32>
    %29 = tpu.iota {dimensions = array<i32: 1>} : vector<8x4xi32>
    %30 = vector.broadcast %28 : vector<8x1xi32> to vector<8x4xi32>
    %31 = arith.cmpi eq, %29, %30 : vector<8x4xi32>
    %cst_15 = arith.constant 0.000000e+00 : f32
    %32 = vector.broadcast %cst_15 : f32 to vector<8x4xf32>
    %33 = arith.select %31, %27, %32 : vector<8x4xi1>, vector<8x4xf32>
    %cst_16 = arith.constant dense<0.000000e+00> : vector<8xf32>
    %34 = vector.multi_reduction <add>, %33, %cst_16 [1] : vector<8x4xf32> to vector<8xf32>
    %35 = vector.shape_cast %34 : vector<8xf32> to vector<8x1xf32>
    %36 = arith.mulf %24, %27 : vector<8x4xf32>
    %cst_17 = arith.constant dense<0.000000e+00> : vector<8xf32>
    %37 = vector.multi_reduction <add>, %36, %cst_17 [1] : vector<8x4xf32> to vector<8xf32>
    %38 = vector.shape_cast %37 : vector<8xf32> to vector<8x1xf32>
    %cst_18 = arith.constant 0.000000e+00 : f32
    %39 = vector.broadcast %cst_18 : f32 to vector<8x1xf32>
    %40 = arith.subf %39, %38 : vector<8x1xf32>
    %c0_19 = arith.constant 0 : index
    %c0_20 = arith.constant 0 : index
    %41 = vector.load %arg7[%c0_19, %c0_20] : memref<8x128xf32, #tpu.memory_space<vmem>>, vector<8x4xf32>
    tpu.vector_store %arg7[%c0_19, %c0_20], %24 {strides = array<i32>} : memref<8x128xf32, #tpu.memory_space<vmem>>, vector<8x4xf32>,
    %c0_21 = arith.constant 0 : index
    %c4 = arith.constant 4 : index
    %42 = vector.load %arg7[%c0_21, %c4] : memref<8x128xf32, #tpu.memory_space<vmem>>, vector<8x1xf32>
    tpu.vector_store %arg7[%c0_21, %c4], %14 {strides = array<i32>} : memref<8x128xf32, #tpu.memory_space<vmem>>, vector<8x1xf32>,
    %c0_22 = arith.constant 0 : index
    %c5 = arith.constant 5 : index
    %43 = vector.load %arg7[%c0_22, %c5] : memref<8x128xf32, #tpu.memory_space<vmem>>, vector<8x1xf32>
    tpu.vector_store %arg7[%c0_22, %c5], %35 {strides = array<i32>} : memref<8x128xf32, #tpu.memory_space<vmem>>, vector<8x1xf32>,
    %c0_23 = arith.constant 0 : index
    %c6 = arith.constant 6 : index
    %44 = vector.load %arg7[%c0_23, %c6] : memref<8x128xf32, #tpu.memory_space<vmem>>, vector<8x1xf32>
    tpu.vector_store %arg7[%c0_23, %c6], %40 {strides = array<i32>} : memref<8x128xf32, #tpu.memory_space<vmem>>, vector<8x1xf32>,
    %cst_24 = arith.constant 0.000000e+00 : f32
    %45 = vector.broadcast %cst_24 : f32 to vector<8x121xf32>
    %c0_25 = arith.constant 0 : index
    %c7 = arith.constant 7 : index
    %46 = vector.load %arg7[%c0_25, %c7] : memref<8x128xf32, #tpu.memory_space<vmem>>, vector<8x121xf32>
    tpu.vector_store %arg7[%c0_25, %c7], %45 {strides = array<i32>} : memref<8x128xf32, #tpu.memory_space<vmem>>, vector<8x121xf32>,
    return
  }
  func.func @transform_0(%arg0: i32) -> (i32, i32) {
    %c0_i32 = arith.constant 0 : i32
    %c0_i32_0 = arith.constant 0 : i32
    return %arg0, %c0_i32 : i32, i32
  }
  func.func @transform_1(%arg0: i32) -> (i32, i32) {
    %c0_i32 = arith.constant 0 : i32
    %c0_i32_0 = arith.constant 0 : i32
    return %arg0, %c0_i32 : i32, i32
  }
  func.func @transform_2(%arg0: i32) -> (i32, i32) {
    %c0_i32 = arith.constant 0 : i32
    %c0_i32_0 = arith.constant 0 : i32
    %c0_i32_1 = arith.constant 0 : i32
    return %c0_i32, %c0_i32_0 : i32, i32
  }
  func.func @transform_3(%arg0: i32) -> (i32, i32) {
    %c0_i32 = arith.constant 0 : i32
    %c0_i32_0 = arith.constant 0 : i32
    %c0_i32_1 = arith.constant 0 : i32
    return %c0_i32, %c0_i32_0 : i32, i32
  }
  func.func @transform_4(%arg0: i32) -> (i32, i32) {
    %c0_i32 = arith.constant 0 : i32
    %c0_i32_0 = arith.constant 0 : i32
    %c0_i32_1 = arith.constant 0 : i32
    return %c0_i32, %c0_i32_0 : i32, i32
  }
  func.func @transform_5(%arg0: i32) -> (i32, i32) {
    %c0_i32 = arith.constant 0 : i32
    %c0_i32_0 = arith.constant 0 : i32
    %c0_i32_1 = arith.constant 0 : i32
    return %c0_i32, %c0_i32_0 : i32, i32
  }
  func.func @transform_6(%arg0: i32) -> (i32, i32) {
    %c0_i32 = arith.constant 0 : i32
    %c0_i32_0 = arith.constant 0 : i32
    return %arg0, %c0_i32 : i32, i32
  }
}

</mosaic_0001>

<llo_original>
// kernel: tpu_custom_call.1
$region0: #{tpu_custom_call.1}
  #allocation0 [shape = 'u32[]', space=smem, size = 0x4, offset = 0x4, fixed_abs, tag = 'smem constant byte address 0x4 - core index']
  #allocation1 [shape = 'u32[144,128]{1,0:T(1,128)}', space=vmem, size = 0x12000, scoped, tag = 'internal scratch']
  %s0 = inlined_call_operand.vmem [shape: f32[8,8], index: 0, kind: input, shape index: {}]
  %s1 = inlined_call_operand.vmem [shape: s32[8,1], index: 1, kind: input, shape index: {}]
  %s2 = inlined_call_operand.vmem [shape: f32[8,128], index: 2, kind: input, shape index: {}]
  %s3 = inlined_call_operand.vmem [shape: f32[1,128], index: 3, kind: input, shape index: {}]
  %s4 = inlined_call_operand.vmem [shape: f32[128,5], index: 4, kind: input, shape index: {}]
  %s5 = inlined_call_operand.vmem [shape: f32[1,5], index: 5, kind: input, shape index: {}]
  %s6 = inlined_call_operand.hbm [shape: f32[8,128], index: 6, kind: output, shape index: {}]
  %s7 = sld [smem:[#allocation0]]
  $region34: #{tpu_custom_call.1} parent=0
    _
  %s9 = ssub.s32 1, %s7
  %s10 = scalar_select 0, %s9, %s7
  $region1: #{tpu_custom_call.1} parent=0
    #allocation2 [shape = 'u8[4096]{0}', space=vmem, size = 0x1000, scoped, tag = 'output window, operand 0, single buffered']
    #allocation3 [shape = 's32[1]{0}', space=sflag, size = 0x4, scoped, tag = 'scoped memory for tpu_custom_call.1']
    %11 = vsyncpa [#allocation3], 0
    // Predicated region
    $region2: #{tpu_custom_call.1} parent=1 // pred_check
      _
    $region3: #{tpu_custom_call.1} parent=1 // pred_check_branch
      %13 = sbr.rel (0) target = $region5
    $region4: #{tpu_custom_call.1} parent=1 // pred_region
      _
    $region5: #{tpu_custom_call.1} parent=1 // pred_fallthru
      _
    // Predicated region
    $region6: #{tpu_custom_call.1} parent=1 // pred_check
      _
    $region7: #{tpu_custom_call.1} parent=1 // pred_check_branch
      %15 = sbr.rel (0) target = $region9
    $region8: #{tpu_custom_call.1} parent=1 // pred_region
      _
    $region9: #{tpu_custom_call.1} parent=1 // pred_fallthru
      _
    // Predicated region
    $region10: #{tpu_custom_call.1} parent=1 // pred_check
      _
    $region11: #{tpu_custom_call.1} parent=1 // pred_check_branch
      %17 = sbr.rel (0) target = $region13
    $region12: #{tpu_custom_call.1} parent=1 // pred_region
      _
    $region13: #{tpu_custom_call.1} parent=1 // pred_fallthru
      _
    // Predicated region
    $region14: #{tpu_custom_call.1} parent=1 // pred_check
      _
    $region15: #{tpu_custom_call.1} parent=1 // pred_check_branch
      %19 = sbr.rel (0) target = $region17
    $region16: #{tpu_custom_call.1} parent=1 // pred_region
      _
    $region17: #{tpu_custom_call.1} parent=1 // pred_fallthru
      _
    // Predicated region
    $region18: #{tpu_custom_call.1} parent=1 // pred_check
      _
    $region19: #{tpu_custom_call.1} parent=1 // pred_check_branch
      %21 = sbr.rel (0) target = $region21
    $region20: #{tpu_custom_call.1} parent=1 // pred_region
      _
    $region21: #{tpu_custom_call.1} parent=1 // pred_fallthru
      _
    // Predicated region
    $region22: #{tpu_custom_call.1} parent=1 // pred_check
      _
    $region23: #{tpu_custom_call.1} parent=1 // pred_check_branch
      %23 = sbr.rel (0) target = $region25
    $region24: #{tpu_custom_call.1} parent=1 // pred_region
      _
    $region25: #{tpu_custom_call.1} parent=1 // pred_fallthru
      _
    %v24 = vld [vmem:[%s0] sm:$0xff]
    %v25 = vld [vmem:[%s2] sm:$0xff]
    %v26 = vld [vmem:[%s3] sm:$0x1]
    %v28 = vlaneseq
    %v29 = vshrl.u32 %v28, 7
    %v30 = vsub.s32 0, %v29
    %v31 = vrot.slane %v26, %v30
    %vm33 = vcmask 64512
    %v35 = vsel %vm33, %v24, 0
    %37 = vmatprep.subr.mxu0 0.0
    %38 = vmatpush1.msra.mxu0 %v25
    %39 = vmatprep.subr.mxu0 0.0
    %40 = vmatpush1.msra.mxu0 0.0
    %41 = vmatprep.subr.mxu0 0.0
    %42 = vmatpush1.msra.mxu0 0.0
    %43 = vmatprep.subr.mxu0 0.0
    %44 = vmatpush1.msra.mxu0 0.0
    %45 = vmatprep.subr.mxu0 0.0
    %46 = vmatpush1.msra.mxu0 0.0
    %47 = vmatprep.subr.mxu0 0.0
    %48 = vmatpush1.msra.mxu0 0.0
    %49 = vmatprep.subr.mxu0 0.0
    %50 = vmatpush1.msra.mxu0 0.0
    %51 = vmatprep.subr.mxu0 0.0
    %52 = vmatpush1.msra.mxu0 0.0
    %53 = vmatprep.subr.mxu0 0.0
    %54 = vmatpush1.msra.mxu0 0.0
    %55 = vmatprep.subr.mxu0 0.0
    %56 = vmatpush1.msra.mxu0 0.0
    %57 = vmatprep.subr.mxu0 0.0
    %58 = vmatpush1.msra.mxu0 0.0
    %59 = vmatprep.subr.mxu0 0.0
    %60 = vmatpush1.msra.mxu0 0.0
    %61 = vmatprep.subr.mxu0 0.0
    %62 = vmatpush1.msra.mxu0 0.0
    %63 = vmatprep.subr.mxu0 0.0
    %64 = vmatpush1.msra.mxu0 0.0
    %65 = vmatprep.subr.mxu0 0.0
    %66 = vmatpush1.msra.mxu0 0.0
    %67 = vmatprep.subr.mxu0 0.0
    %68 = vmatpush1.msra.mxu0 0.0
    %69 = vmatprep.subr.mxu0 0.0
    %70 = vmatpush1.msra.mxu0 0.0
    %71 = vmatprep.subr.mxu0 0.0
    %72 = vmatpush1.msra.mxu0 0.0
    %73 = vmatprep.subr.mxu0 0.0
    %74 = vmatpush1.msra.mxu0 0.0
    %75 = vmatprep.subr.mxu0 0.0
    %76 = vmatpush1.msra.mxu0 0.0
    %77 = vmatprep.subr.mxu0 0.0
    %78 = vmatpush1.msra.mxu0 0.0
    %79 = vmatprep.subr.mxu0 0.0
    %80 = vmatpush1.msra.mxu0 0.0
    %81 = vmatprep.subr.mxu0 0.0
    %82 = vmatpush1.msra.mxu0 0.0
    %83 = vmatprep.subr.mxu0 0.0
    %84 = vmatpush1.msra.mxu0 0.0
    %85 = vmatprep.subr.mxu0 0.0
    %86 = vmatpush1.msra.mxu0 0.0
    %87 = vmatprep.subr.mxu0 0.0
    %88 = vmatpush1.msra.mxu0 0.0
    %89 = vmatprep.subr.mxu0 0.0
    %90 = vmatpush1.msra.mxu0 0.0
    %91 = vmatprep.subr.mxu0 0.0
    %92 = vmatpush1.msra.mxu0 0.0
    %93 = vmatprep.subr.mxu0 0.0
    %94 = vmatpush1.msra.mxu0 0.0
    %95 = vmatprep.subr.mxu0 0.0
    %96 = vmatpush1.msra.mxu0 0.0
    %97 = vmatprep.subr.mxu0 0.0
    %98 = vmatpush1.msra.mxu0 0.0
    %99 = vmatprep.subr.mxu0 0.0
    %100 = vmatpush1.msra.mxu0 0.0
    %101 = vmatprep.mubr.f32.mxu0 0.0
    %102 = vmatmul.mubr.f32.gmra.mrb[0].mxu0 %v35
    %v103 = vpop.f32.mrb[0].mxu0
    %v104 = vadd.f32 %v31, %v103
    %v105 = vpop.f32.mrb[0].mxu0
    %106 = vdwg.mxu0
    %v107 = vmax.f32 %v104, 0.0
    %v108 = vld [vmem:[%s4] sm:$0xff]
    %v109 = vld [vmem:[%s4 + $0x8] sm:$0xff]
    %v110 = vld [vmem:[%s4 + $0x10] sm:$0xff]
    %v111 = vld [vmem:[%s4 + $0x18] sm:$0xff]
    %v112 = vld [vmem:[%s4 + $0x20] sm:$0xff]
    %v113 = vld [vmem:[%s4 + $0x28] sm:$0xff]
    %v114 = vld [vmem:[%s4 + $0x30] sm:$0xff]
    %v115 = vld [vmem:[%s4 + $0x38] sm:$0xff]
    %v116 = vld [vmem:[%s4 + $0x40] sm:$0xff]
    %v117 = vld [vmem:[%s4 + $0x48] sm:$0xff]
    %v118 = vld [vmem:[%s4 + $0x50] sm:$0xff]
    %v119 = vld [vmem:[%s4 + $0x58] sm:$0xff]
    %v120 = vld [vmem:[%s4 + $0x60] sm:$0xff]
    %v121 = vld [vmem:[%s4 + $0x68] sm:$0xff]
    %v122 = vld [vmem:[%s4 + $0x70] sm:$0xff]
    %v123 = vld [vmem:[%s4 + $0x78] sm:$0xff]
    %v124 = vld [vmem:[%s5] sm:$0x1]
    %v126 = vlaneseq
    %v127 = vshrl.u32 %v126, 7
    %v128 = vsub.s32 0, %v127
    %v129 = vrot.slane %v124, %v128
    %131 = vmatprep.subr.mxu0 0.0
    %132 = vmatpush1.msra.mxu0 %v108
    %133 = vmatprep.subr.mxu0 0.0
    %134 = vmatpush1.msra.mxu0 %v109
    %135 = vmatprep.subr.mxu0 0.0
    %136 = vmatpush1.msra.mxu0 %v110
    %137 = vmatprep.subr.mxu0 0.0
    %138 = vmatpush1.msra.mxu0 %v111
    %139 = vmatprep.subr.mxu0 0.0
    %140 = vmatpush1.msra.mxu0 %v112
    %141 = vmatprep.subr.mxu0 0.0
    %142 = vmatpush1.msra.mxu0 %v113
    %143 = vmatprep.subr.mxu0 0.0
    %144 = vmatpush1.msra.mxu0 %v114
    %145 = vmatprep.subr.mxu0 0.0
    %146 = vmatpush1.msra.mxu0 %v115
    %147 = vmatprep.subr.mxu0 0.0
    %148 = vmatpush1.msra.mxu0 %v116
    %149 = vmatprep.subr.mxu0 0.0
    %150 = vmatpush1.msra.mxu0 %v117
    %151 = vmatprep.subr.mxu0 0.0
    %152 = vmatpush1.msra.mxu0 %v118
    %153 = vmatprep.subr.mxu0 0.0
    %154 = vmatpush1.msra.mxu0 %v119
    %155 = vmatprep.subr.mxu0 0.0
    %156 = vmatpush1.msra.mxu0 %v120
    %157 = vmatprep.subr.mxu0 0.0
    %158 = vmatpush1.msra.mxu0 %v121
    %159 = vmatprep.subr.mxu0 0.0
    %160 = vmatpush1.msra.mxu0 %v122
    %161 = vmatprep.subr.mxu0 0.0
    %162 = vmatpush1.msra.mxu0 %v123
    %163 = vmatprep.subr.mxu0 0.0
    %164 = vmatpush1.msra.mxu0 0.0
    %165 = vmatprep.subr.mxu0 0.0
    %166 = vmatpush1.msra.mxu0 0.0
    %167 = vmatprep.subr.mxu0 0.0
    %168 = vmatpush1.msra.mxu0 0.0
    %169 = vmatprep.subr.mxu0 0.0
    %170 = vmatpush1.msra.mxu0 0.0
    %171 = vmatprep.subr.mxu0 0.0
    %172 = vmatpush1.msra.mxu0 0.0
    %173 = vmatprep.subr.mxu0 0.0
    %174 = vmatpush1.msra.mxu0 0.0
    %175 = vmatprep.subr.mxu0 0.0
    %176 = vmatpush1.msra.mxu0 0.0
    %177 = vmatprep.subr.mxu0 0.0
    %178 = vmatpush1.msra.mxu0 0.0
    %179 = vmatprep.subr.mxu0 0.0
    %180 = vmatpush1.msra.mxu0 0.0
    %181 = vmatprep.subr.mxu0 0.0
    %182 = vmatpush1.msra.mxu0 0.0
    %183 = vmatprep.subr.mxu0 0.0
    %184 = vmatpush1.msra.mxu0 0.0
    %185 = vmatprep.subr.mxu0 0.0
    %186 = vmatpush1.msra.mxu0 0.0
    %187 = vmatprep.subr.mxu0 0.0
    %188 = vmatpush1.msra.mxu0 0.0
    %189 = vmatprep.subr.mxu0 0.0
    %190 = vmatpush1.msra.mxu0 0.0
    %191 = vmatprep.subr.mxu0 0.0
    %192 = vmatpush1.msra.mxu0 0.0
    %193 = vmatprep.subr.mxu0 0.0
    %194 = vmatpush1.msra.mxu0 0.0
    %195 = vmatprep.mubr.f32.mxu0 0.0
    %196 = vmatmul.mubr.f32.gmra.mrb[0].mxu0 %v107
    %v197 = vpop.f32.mrb[0].mxu0
    %v198 = vadd.f32 %v129, %v197
    %v199 = vpop.f32.mrb[0].mxu0
    %200 = vdwg.mxu0
    %vm201 = vcmask 31744
    %v202 = vsel %vm201, %v198, -inf
    %203 = vmax.xlane.f32.xlu0 %v202
    %v204 = vpop.xlane.xlu0 %203
    %v205 = vsub.f32 %v198, %v204
    %v206 = vmul.f32 %v205, 1.442695
    %v207 = vpow.pop %v206
    %v208 = vsel %vm201, %v207, 0.0
    %209 = vadd.xlane.f32.xlu0 %v208
    %v210 = vpop.xlane.xlu0 %209
    %v211 = vrcp.pop %v210
    %v212 = vmul.f32 %v207, %v211
    %v213 = vlog2.pop %v210
    %v214 = vmul.f32 %v213, 0.6931472
    %v215 = vsub.f32 %v205, %v214
    %v216 = vld [vmem:[%s1] sm:$0xff]
    %v217 = vlaneseq
    %v218 = vand.u32 %v217, 127
    %219 = vset.pattern.permute.xlu0 0
    %220 = vperm.xlu0 %219, %v216
    %v221 = vpop.permute.xlu0 %220
    %vm222 = vcmp.eq.s32.totalorder %v218, %v221
    %v223 = vsel %vm222, %v215, 0.0
    %v224 = vsel %vm201, %v223, 0.0
    %225 = vadd.xlane.f32.xlu0 %v224
    %v226 = vpop.xlane.xlu0 %225
    %v227 = vmul.f32 %v212, %v215
    %v228 = vsel %vm201, %v227, 0.0
    %229 = vadd.xlane.f32.xlu0 %v228
    %v230 = vpop.xlane.xlu0 %229
    %v231 = vsub.f32 0.0, %v230
    %232 = vst.msk [vmem:[#allocation2] sm:$0xff] %vm201, %v212
    %vm233 = vcmask 39968
    %234 = vst.msk [vmem:[#allocation2] sm:$0xff] %vm233, %v198
    %vm235 = vcmask 48168
    %236 = vst.msk [vmem:[#allocation2] sm:$0xff] %vm235, %v226
    %vm237 = vcmask 56368
    %238 = vst.msk [vmem:[#allocation2] sm:$0xff] %vm237, %v231
    %vm239 = vcmask 1047608
    %240 = vst.msk [vmem:[#allocation2] sm:$0xff] %vm239, 0.0
    // Predicated region
    $region26: #{tpu_custom_call.1} parent=1 // pred_check
      _
    $region27: #{tpu_custom_call.1} parent=1 // pred_check_branch
      %242 = sbr.rel (0) target = $region29
    $region28: #{tpu_custom_call.1} parent=1 // pred_region
      %s244 = ssub.s32 128, 128
      %245 = vsyncadd [#allocation3], %s244
      %s247 = sshll.u32 [#allocation2], 4
      %s248 = int_to_ptr.vmem [resolvable:$true] %s247
      %250 = dma.vmem_to_hbm [thread:$0]  %s248, 128, %s6, [#allocation3]
    $region29: #{tpu_custom_call.1} parent=1 // pred_fallthru
      _
    // Predicated region
    $region30: #{tpu_custom_call.1} parent=1 // pred_check
      _
    $region31: #{tpu_custom_call.1} parent=1 // pred_check_branch
      %252 = sbr.rel (0) target = $region33
    $region32: #{tpu_custom_call.1} parent=1 // pred_region
      %253 = dma.done [#allocation3], 128
    $region33: #{tpu_custom_call.1} parent=1 // pred_fallthru
      _
    %254 = vsyncpa [#allocation3], 1

</llo_original>
